<compile_context>
chip_gen: v7x
topology: tpu7x:2x2x1
jax: 0.10.0
libtpu: 0.0.40
codegen_flags: <defaults>
</compile_context>

<pallas_src>
import functools

import jax
import jax.numpy as jnp
from jax.experimental import pallas as pl
from jax.experimental.pallas import tpu as pltpu


def _round_up(x: int, m: int) -> int:
    return ((x + m - 1) // m) * m


def _reversal_ensemble_kernel(
    z_ref,
    w1_ref, b1_ref,        # fused first layers          (in, 3*in), (1, 3*in)
    w2_ref, b2_ref,        # block-diag second layers    (3*in, in + in//2), (1, in + in//2)
    w3a_ref, w3b_ref,      # output layers, split:       (in + in//2, 3*out), (3*in, 3*out)
    b3_ref,                # fused output bias           (1, 3*out)
    out_ref,               # fused output                (TB, 3*out)
    *, bound: bool,
):
    f32 = jnp.float32
    z = z_ref[...].astype(f32)

    # Stage 1: all three first layers in one matmul.  h_all = [h1a | h2 | h3a]
    h_all = jnp.dot(z, w1_ref[...].astype(f32), preferred_element_type=f32)
    h_all = jnp.maximum(h_all + b1_ref[...].astype(f32), 0.0)

    # Stage 2: mlp1's and mlp3's second layers as one block-diagonal matmul.
    # h2_all = [h1b | h3b]   (mlp2 rows of W2 are zero)
    h2_all = jnp.dot(h_all, w2_ref[...].astype(f32), preferred_element_type=f32)
    h2_all = jnp.maximum(h2_all + b2_ref[...].astype(f32), 0.0)

    # Stage 3: two accumulating matmuls (≡ one matmul over concat([h2_all, h_all]),
    # but without the cross-lane concat).  out = [b | c | d]
    out = jnp.dot(h2_all, w3a_ref[...].astype(f32), preferred_element_type=f32)
    out = out + jnp.dot(h_all, w3b_ref[...].astype(f32), preferred_element_type=f32)
    out = out + b3_ref[...].astype(f32)

    if bound:
        out = jnp.tanh(out)   # EUP slot — essentially free alongside MXU/VPU work

    out_ref[...] = out.astype(out_ref.dtype)


def init_params(key, in_dim, out_dim, dtype=jnp.float32):
    """Deterministic synthetic params. Linear weights stored PyTorch-style (out, in)."""
    half = in_dim // 2
    shapes = {
        # mlp1
        "w11": (in_dim, in_dim), "b11": (in_dim,),
        "w12": (in_dim, in_dim), "b12": (in_dim,),
        "w13": (out_dim, in_dim), "b13": (out_dim,),
        # mlp2
        "w21": (in_dim, in_dim), "b21": (in_dim,),
        "w22": (out_dim, in_dim), "b22": (out_dim,),
        # mlp3
        "w31": (in_dim, in_dim), "b31": (in_dim,),
        "w32": (half, in_dim), "b32": (half,),
        "w33": (out_dim, half), "b33": (out_dim,),
    }
    params = {}
    keys = jax.random.split(key, len(shapes))
    for k_rng, (name, shp) in zip(keys, sorted(shapes.items())):
        fan_in = shp[-1] if len(shp) == 2 else shp[0]
        bnd = 1.0 / jnp.sqrt(jnp.asarray(fan_in, jnp.float32))
        params[name] = jax.random.uniform(k_rng, shp, dtype, -bnd, bnd)
    return params


def pack_params(params, dtype=jnp.float32):
    """One-time packing of the 16 PyTorch-style tensors into 4 fused weights + 3 biases.

    Done at init time (outside the per-call path) so no transposes/concats are
    re-materialized in HBM on every forward call.
    """
    in_dim = params["w11"].shape[0]
    half = in_dim // 2
    out_dim = params["w13"].shape[0]

    # Stage 1: z -> [h1a | h2 | h3a]
    w1 = jnp.concatenate(
        [params["w11"].T, params["w21"].T, params["w31"].T], axis=1)            # (in, 3*in)
    b1 = jnp.concatenate([params["b11"], params["b21"], params["b31"]])[None, :]

    # Stage 2: [h1a | h2 | h3a] -> [h1b | h3b]   (block-diagonal; h2 rows are zero)
    w2 = jnp.zeros((3 * in_dim, in_dim + half), dtype)
    w2 = w2.at[0:in_dim, 0:in_dim].set(params["w12"].T)
    w2 = w2.at[2 * in_dim:3 * in_dim, in_dim:in_dim + half].set(params["w32"].T)
    b2 = jnp.concatenate([params["b12"], params["b32"]])[None, :]

    # Stage 3a: [h1b | h3b] -> contributions to [b | _ | d]
    w3a = jnp.zeros((in_dim + half, 3 * out_dim), dtype)
    w3a = w3a.at[0:in_dim, 0:out_dim].set(params["w13"].T)                        # h1b -> b
    w3a = w3a.at[in_dim:in_dim + half, 2 * out_dim:3 * out_dim].set(params["w33"].T)  # h3b -> d

    # Stage 3b: [h1a | h2 | h3a] -> contribution to [_ | c | _]
    w3b = jnp.zeros((3 * in_dim, 3 * out_dim), dtype)
    w3b = w3b.at[in_dim:2 * in_dim, out_dim:2 * out_dim].set(params["w22"].T)     # h2  -> c

    b3 = jnp.concatenate([params["b13"], params["b22"], params["b33"]])[None, :]

    return {
        "w1": w1.astype(dtype), "b1": b1.astype(dtype),
        "w2": w2.astype(dtype), "b2": b2.astype(dtype),
        "w3a": w3a.astype(dtype), "w3b": w3b.astype(dtype), "b3": b3.astype(dtype),
        "in_dim": in_dim, "out_dim": out_dim,
    }


def reversal_ensemble_forward(z, packed, *, bound=False, max_tile=512):
    """Run the ReversalEnsemble forward pass as one fused Pallas kernel. Returns [b, c, d]."""
    B, in_dim = z.shape
    assert in_dim == packed["in_dim"]
    out_dim = packed["out_dim"]
    dtype = z.dtype

    # Batch tile: multiple of 8 (f32 sublane), capped so the grid pipelines / splits
    # across TensorCores for large B; pad the batch to a whole number of tiles.
    TB = min(max_tile, _round_up(B, 8))
    B_pad = _round_up(B, TB)
    if B_pad != B:
        z = jnp.pad(z, ((0, B_pad - B), (0, 0)))
    grid = (B_pad // TB,)

    param_inputs = [packed["w1"], packed["b1"],
                    packed["w2"], packed["b2"],
                    packed["w3a"], packed["w3b"], packed["b3"]]
    # Full-array blocks with a constant index_map: params stay resident in VMEM
    # (no re-DMA across batch tiles).
    param_specs = [pl.BlockSpec(p.shape, lambda i: (0, 0)) for p in param_inputs]

    out_fused = pl.pallas_call(
        functools.partial(_reversal_ensemble_kernel, bound=bound),
        grid=grid,
        in_specs=[pl.BlockSpec((TB, in_dim), lambda i: (i, 0))] + param_specs,
        out_specs=pl.BlockSpec((TB, 3 * out_dim), lambda i: (i, 0)),
        out_shape=jax.ShapeDtypeStruct((B_pad, 3 * out_dim), dtype),
        compiler_params=pltpu.CompilerParams(
            dimension_semantics=("parallel",),
            # Tiles + params are far below this even at TB=512; 32 MiB fits every
            # generation's scoped-VMEM budget (v7x physical = 64 MiB).
            vmem_limit_bytes=32 * 1024 * 1024,
        ),
    )(z, *param_inputs)

    out_fused = out_fused[:B]
    b_out = out_fused[:, 0:out_dim]
    c_out = out_fused[:, out_dim:2 * out_dim]
    d_out = out_fused[:, 2 * out_dim:3 * out_dim]
    return [b_out, c_out, d_out]


def reversal_ensemble_reference(z, params, *, bound=False):
    """Pure-JAX reference matching the PyTorch module (unfused, PyTorch-style weights)."""
    def lin(x, w, b):
        return x @ w.T + b

    relu = lambda x: jnp.maximum(x, 0.0)
    maybe_tanh = (lambda x: jnp.tanh(x)) if bound else (lambda x: x)

    h = relu(lin(z, params["w11"], params["b11"]))
    h = relu(lin(h, params["w12"], params["b12"]))
    b_out = maybe_tanh(lin(h, params["w13"], params["b13"]))

    h = relu(lin(z, params["w21"], params["b21"]))
    c_out = maybe_tanh(lin(h, params["w22"], params["b22"]))

    h = relu(lin(z, params["w31"], params["b31"]))
    h = relu(lin(h, params["w32"], params["b32"]))
    d_out = maybe_tanh(lin(h, params["w33"], params["b33"]))

    return [b_out, c_out, d_out]


if __name__ == "__main__":
    key = jax.random.PRNGKey(0)
    k_z, k_z2, k_p = jax.random.split(key, 3)

    IN_DIM, OUT_DIM = 32, 16
    params = init_params(k_p, IN_DIM, OUT_DIM)
    packed = pack_params(params)          # one-time packing (init-time cost)

    # Case 1: small batch, bound=False (matches ReversalEnsemble(in_dim, out_dim))
    B = 8
    z = jax.random.normal(k_z, (B, IN_DIM), jnp.float32)
    outs = jax.block_until_ready(reversal_ensemble_forward(z, packed, bound=False))
    refs = reversal_ensemble_reference(z, params, bound=False)
    for o, r in zip(outs, refs):
        assert o.shape == (B, OUT_DIM) and o.dtype == jnp.float32
        assert jnp.allclose(o, r, atol=1e-5, rtol=1e-5), "mismatch vs reference (bound=False)"

    # Case 2: non-multiple-of-8 batch (exercises padding) with bound=True (tanh path)
    B2 = 70
    z2 = jax.random.normal(k_z2, (B2, IN_DIM), jnp.float32)
    outs2 = jax.block_until_ready(reversal_ensemble_forward(z2, packed, bound=True))
    refs2 = reversal_ensemble_reference(z2, params, bound=True)
    for o, r in zip(outs2, refs2):
        assert o.shape == (B2, OUT_DIM) and o.dtype == jnp.float32
        assert jnp.allclose(o, r, atol=1e-5, rtol=1e-5), "mismatch vs reference (bound=True)"

    print("KERNEL_OK")
</pallas_src>

<mosaic_0001>
module attributes {stable_mosaic.version = 11 : i64} {
  func.func @_reversal_ensemble_kernel(%arg0: i32, %arg1: memref<8x32xf32, #tpu.memory_space<vmem>>, %arg2: memref<32x96xf32, #tpu.memory_space<vmem>>, %arg3: memref<1x96xf32, #tpu.memory_space<vmem>>, %arg4: memref<96x48xf32, #tpu.memory_space<vmem>>, %arg5: memref<1x48xf32, #tpu.memory_space<vmem>>, %arg6: memref<48x48xf32, #tpu.memory_space<vmem>>, %arg7: memref<96x48xf32, #tpu.memory_space<vmem>>, %arg8: memref<1x48xf32, #tpu.memory_space<vmem>>, %arg9: memref<8x48xf32, #tpu.memory_space<vmem>>) attributes {dimension_semantics = [#tpu.dimension_semantics<parallel>], iteration_bounds = array<i64: 1>, scalar_prefetch = 0 : i64, scratch_operands = 0 : i64, tpu.core_type = #tpu.core_type<tc>, window_params = [{transform_indices = @transform_0, window_bounds = array<i64: 8, 32>}, {pipeline_mode = #tpu.pipeline_mode<synchronous>, transform_indices = @transform_1, window_bounds = array<i64: 32, 96>}, {pipeline_mode = #tpu.pipeline_mode<synchronous>, transform_indices = @transform_2, window_bounds = array<i64: 1, 96>}, {pipeline_mode = #tpu.pipeline_mode<synchronous>, transform_indices = @transform_3, window_bounds = array<i64: 96, 48>}, {pipeline_mode = #tpu.pipeline_mode<synchronous>, transform_indices = @transform_4, window_bounds = array<i64: 1, 48>}, {pipeline_mode = #tpu.pipeline_mode<synchronous>, transform_indices = @transform_5, window_bounds = array<i64: 48, 48>}, {pipeline_mode = #tpu.pipeline_mode<synchronous>, transform_indices = @transform_6, window_bounds = array<i64: 96, 48>}, {pipeline_mode = #tpu.pipeline_mode<synchronous>, transform_indices = @transform_7, window_bounds = array<i64: 1, 48>}, {transform_indices = @transform_8, window_bounds = array<i64: 8, 48>}]} {
    %c0 = arith.constant 0 : index
    %c0_0 = arith.constant 0 : index
    %0 = vector.load %arg1[%c0, %c0_0] : memref<8x32xf32, #tpu.memory_space<vmem>>, vector<8x32xf32>
    %c0_1 = arith.constant 0 : index
    %c0_2 = arith.constant 0 : index
    %1 = vector.load %arg2[%c0_1, %c0_2] : memref<32x96xf32, #tpu.memory_space<vmem>>, vector<32x96xf32>
    %cst = arith.constant dense<0.000000e+00> : vector<8x96xf32>
    %2 = tpu.matmul %0, %1, %cst {dimension_numbers = #tpu.dot_dimension_numbers<[1], [0], [0], [1], [0, 0, 1, 1], [], []>} : vector<8x32xf32>, vector<32x96xf32>, vector<8x96xf32> -> vector<8x96xf32>
    %c0_3 = arith.constant 0 : index
    %c0_4 = arith.constant 0 : index
    %3 = vector.load %arg3[%c0_3, %c0_4] : memref<1x96xf32, #tpu.memory_space<vmem>>, vector<1x96xf32>
    %4 = vector.broadcast %3 : vector<1x96xf32> to vector<8x96xf32>
    %5 = arith.addf %2, %4 : vector<8x96xf32>
    %cst_5 = arith.constant 0.000000e+00 : f32
    %6 = vector.broadcast %cst_5 : f32 to vector<8x96xf32>
    %7 = arith.maximumf %5, %6 : vector<8x96xf32>
    %c0_6 = arith.constant 0 : index
    %c0_7 = arith.constant 0 : index
    %8 = vector.load %arg4[%c0_6, %c0_7] : memref<96x48xf32, #tpu.memory_space<vmem>>, vector<96x48xf32>
    %cst_8 = arith.constant dense<0.000000e+00> : vector<8x48xf32>
    %9 = tpu.matmul %7, %8, %cst_8 {dimension_numbers = #tpu.dot_dimension_numbers<[1], [0], [0], [1], [0, 0, 1, 1], [], []>} : vector<8x96xf32>, vector<96x48xf32>, vector<8x48xf32> -> vector<8x48xf32>
    %c0_9 = arith.constant 0 : index
    %c0_10 = arith.constant 0 : index
    %10 = vector.load %arg5[%c0_9, %c0_10] : memref<1x48xf32, #tpu.memory_space<vmem>>, vector<1x48xf32>
    %11 = vector.broadcast %10 : vector<1x48xf32> to vector<8x48xf32>
    %12 = arith.addf %9, %11 : vector<8x48xf32>
    %cst_11 = arith.constant 0.000000e+00 : f32
    %13 = vector.broadcast %cst_11 : f32 to vector<8x48xf32>
    %14 = arith.maximumf %12, %13 : vector<8x48xf32>
    %c0_12 = arith.constant 0 : index
    %c0_13 = arith.constant 0 : index
    %15 = vector.load %arg6[%c0_12, %c0_13] : memref<48x48xf32, #tpu.memory_space<vmem>>, vector<48x48xf32>
    %cst_14 = arith.constant dense<0.000000e+00> : vector<8x48xf32>
    %16 = tpu.matmul %14, %15, %cst_14 {dimension_numbers = #tpu.dot_dimension_numbers<[1], [0], [0], [1], [0, 0, 1, 1], [], []>} : vector<8x48xf32>, vector<48x48xf32>, vector<8x48xf32> -> vector<8x48xf32>
    %c0_15 = arith.constant 0 : index
    %c0_16 = arith.constant 0 : index
    %17 = vector.load %arg7[%c0_15, %c0_16] : memref<96x48xf32, #tpu.memory_space<vmem>>, vector<96x48xf32>
    %cst_17 = arith.constant dense<0.000000e+00> : vector<8x48xf32>
    %18 = tpu.matmul %7, %17, %cst_17 {dimension_numbers = #tpu.dot_dimension_numbers<[1], [0], [0], [1], [0, 0, 1, 1], [], []>} : vector<8x96xf32>, vector<96x48xf32>, vector<8x48xf32> -> vector<8x48xf32>
    %19 = arith.addf %16, %18 : vector<8x48xf32>
    %c0_18 = arith.constant 0 : index
    %c0_19 = arith.constant 0 : index
    %20 = vector.load %arg8[%c0_18, %c0_19] : memref<1x48xf32, #tpu.memory_space<vmem>>, vector<1x48xf32>
    %21 = vector.broadcast %20 : vector<1x48xf32> to vector<8x48xf32>
    %22 = arith.addf %19, %21 : vector<8x48xf32>
    %c0_20 = arith.constant 0 : index
    %c0_21 = arith.constant 0 : index
    %23 = vector.load %arg9[%c0_20, %c0_21] : memref<8x48xf32, #tpu.memory_space<vmem>>, vector<8x48xf32>
    tpu.vector_store %arg9[%c0_20, %c0_21], %22 {strides = array<i32>} : memref<8x48xf32, #tpu.memory_space<vmem>>, vector<8x48xf32>,
    return
  }
  func.func @transform_0(%arg0: i32) -> (i32, i32) {
    %c0_i32 = arith.constant 0 : i32
    %c0_i32_0 = arith.constant 0 : i32
    return %arg0, %c0_i32 : i32, i32
  }
  func.func @transform_1(%arg0: i32) -> (i32, i32) {
    %c0_i32 = arith.constant 0 : i32
    %c0_i32_0 = arith.constant 0 : i32
    %c0_i32_1 = arith.constant 0 : i32
    return %c0_i32, %c0_i32_0 : i32, i32
  }
  func.func @transform_2(%arg0: i32) -> (i32, i32) {
    %c0_i32 = arith.constant 0 : i32
    %c0_i32_0 = arith.constant 0 : i32
    %c0_i32_1 = arith.constant 0 : i32
    return %c0_i32, %c0_i32_0 : i32, i32
  }
  func.func @transform_3(%arg0: i32) -> (i32, i32) {
    %c0_i32 = arith.constant 0 : i32
    %c0_i32_0 = arith.constant 0 : i32
    %c0_i32_1 = arith.constant 0 : i32
    return %c0_i32, %c0_i32_0 : i32, i32
  }
  func.func @transform_4(%arg0: i32) -> (i32, i32) {
    %c0_i32 = arith.constant 0 : i32
    %c0_i32_0 = arith.constant 0 : i32
    %c0_i32_1 = arith.constant 0 : i32
    return %c0_i32, %c0_i32_0 : i32, i32
  }
  func.func @transform_5(%arg0: i32) -> (i32, i32) {
    %c0_i32 = arith.constant 0 : i32
    %c0_i32_0 = arith.constant 0 : i32
    %c0_i32_1 = arith.constant 0 : i32
    return %c0_i32, %c0_i32_0 : i32, i32
  }
  func.func @transform_6(%arg0: i32) -> (i32, i32) {
    %c0_i32 = arith.constant 0 : i32
    %c0_i32_0 = arith.constant 0 : i32
    %c0_i32_1 = arith.constant 0 : i32
    return %c0_i32, %c0_i32_0 : i32, i32
  }
  func.func @transform_7(%arg0: i32) -> (i32, i32) {
    %c0_i32 = arith.constant 0 : i32
    %c0_i32_0 = arith.constant 0 : i32
    %c0_i32_1 = arith.constant 0 : i32
    return %c0_i32, %c0_i32_0 : i32, i32
  }
  func.func @transform_8(%arg0: i32) -> (i32, i32) {
    %c0_i32 = arith.constant 0 : i32
    %c0_i32_0 = arith.constant 0 : i32
    return %arg0, %c0_i32 : i32, i32
  }
}

</mosaic_0001>

<llo_original>
// kernel: tpu_custom_call.1
$region0: #{tpu_custom_call.1}
  #allocation0 [shape = 'u32[]', space=smem, size = 0x4, offset = 0x4, fixed_abs, tag = 'smem constant byte address 0x4 - core index']
  #allocation1 [shape = 'u32[144,128]{1,0:T(1,128)}', space=vmem, size = 0x12000, scoped, tag = 'internal scratch']
  %s0 = inlined_call_operand.vmem [shape: f32[8,32], index: 0, kind: input, shape index: {}]
  %s1 = inlined_call_operand.vmem [shape: f32[32,96], index: 1, kind: input, shape index: {}]
  %s2 = inlined_call_operand.vmem [shape: f32[1,96], index: 2, kind: input, shape index: {}]
  %s3 = inlined_call_operand.vmem [shape: f32[96,48], index: 3, kind: input, shape index: {}]
  %s4 = inlined_call_operand.vmem [shape: f32[1,48], index: 4, kind: input, shape index: {}]
  %s5 = inlined_call_operand.vmem [shape: f32[48,48], index: 5, kind: input, shape index: {}]
  %s6 = inlined_call_operand.vmem [shape: f32[96,48], index: 6, kind: input, shape index: {}]
  %s7 = inlined_call_operand.vmem [shape: f32[1,48], index: 7, kind: input, shape index: {}]
  %s8 = inlined_call_operand.hbm [shape: f32[8,48], index: 8, kind: output, shape index: {}]
  %s9 = sld [smem:[#allocation0]]
  $region42: #{tpu_custom_call.1} parent=0
    _
  %s11 = ssub.s32 1, %s9
  %s12 = scalar_select 0, %s11, %s9
  $region1: #{tpu_custom_call.1} parent=0
    #allocation2 [shape = 'u8[4096]{0}', space=vmem, size = 0x1000, scoped, tag = 'output window, operand 0, single buffered']
    #allocation3 [shape = 's32[1]{0}', space=sflag, size = 0x4, scoped, tag = 'scoped memory for tpu_custom_call.1']
    %13 = vsyncpa [#allocation3], 0
    // Predicated region
    $region2: #{tpu_custom_call.1} parent=1 // pred_check
      _
    $region3: #{tpu_custom_call.1} parent=1 // pred_check_branch
      %15 = sbr.rel (0) target = $region5
    $region4: #{tpu_custom_call.1} parent=1 // pred_region
      _
    $region5: #{tpu_custom_call.1} parent=1 // pred_fallthru
      _
    // Predicated region
    $region6: #{tpu_custom_call.1} parent=1 // pred_check
      _
    $region7: #{tpu_custom_call.1} parent=1 // pred_check_branch
      %17 = sbr.rel (0) target = $region9
    $region8: #{tpu_custom_call.1} parent=1 // pred_region
      _
    $region9: #{tpu_custom_call.1} parent=1 // pred_fallthru
      _
    // Predicated region
    $region10: #{tpu_custom_call.1} parent=1 // pred_check
      _
    $region11: #{tpu_custom_call.1} parent=1 // pred_check_branch
      %19 = sbr.rel (0) target = $region13
    $region12: #{tpu_custom_call.1} parent=1 // pred_region
      _
    $region13: #{tpu_custom_call.1} parent=1 // pred_fallthru
      _
    // Predicated region
    $region14: #{tpu_custom_call.1} parent=1 // pred_check
      _
    $region15: #{tpu_custom_call.1} parent=1 // pred_check_branch
      %21 = sbr.rel (0) target = $region17
    $region16: #{tpu_custom_call.1} parent=1 // pred_region
      _
    $region17: #{tpu_custom_call.1} parent=1 // pred_fallthru
      _
    // Predicated region
    $region18: #{tpu_custom_call.1} parent=1 // pred_check
      _
    $region19: #{tpu_custom_call.1} parent=1 // pred_check_branch
      %23 = sbr.rel (0) target = $region21
    $region20: #{tpu_custom_call.1} parent=1 // pred_region
      _
    $region21: #{tpu_custom_call.1} parent=1 // pred_fallthru
      _
    // Predicated region
    $region22: #{tpu_custom_call.1} parent=1 // pred_check
      _
    $region23: #{tpu_custom_call.1} parent=1 // pred_check_branch
      %25 = sbr.rel (0) target = $region25
    $region24: #{tpu_custom_call.1} parent=1 // pred_region
      _
    $region25: #{tpu_custom_call.1} parent=1 // pred_fallthru
      _
    // Predicated region
    $region26: #{tpu_custom_call.1} parent=1 // pred_check
      _
    $region27: #{tpu_custom_call.1} parent=1 // pred_check_branch
      %27 = sbr.rel (0) target = $region29
    $region28: #{tpu_custom_call.1} parent=1 // pred_region
      _
    $region29: #{tpu_custom_call.1} parent=1 // pred_fallthru
      _
    // Predicated region
    $region30: #{tpu_custom_call.1} parent=1 // pred_check
      _
    $region31: #{tpu_custom_call.1} parent=1 // pred_check_branch
      %29 = sbr.rel (0) target = $region33
    $region32: #{tpu_custom_call.1} parent=1 // pred_region
      _
    $region33: #{tpu_custom_call.1} parent=1 // pred_fallthru
      _
    %v30 = vld [vmem:[%s0] sm:$0xff]
    %v31 = vld [vmem:[%s1] sm:$0xff]
    %v32 = vld [vmem:[%s1 + $0x8] sm:$0xff]
    %v33 = vld [vmem:[%s1 + $0x10] sm:$0xff]
    %v34 = vld [vmem:[%s1 + $0x18] sm:$0xff]
    %v35 = vld [vmem:[%s2] sm:$0x1]
    %v37 = vlaneseq
    %v38 = vshrl.u32 %v37, 7
    %v39 = vsub.s32 0, %v38
    %v40 = vrot.slane %v35, %v39
    %vm42 = vcmask 261120
    %v44 = vsel %vm42, %v30, 0
    %46 = vmatprep.subr.mxu0 0.0
    %47 = vmatpush1.msra.mxu0 %v31
    %48 = vmatprep.subr.mxu0 0.0
    %49 = vmatpush1.msra.mxu0 %v32
    %50 = vmatprep.subr.mxu0 0.0
    %51 = vmatpush1.msra.mxu0 %v33
    %52 = vmatprep.subr.mxu0 0.0
    %53 = vmatpush1.msra.mxu0 %v34
    %54 = vmatprep.subr.mxu0 0.0
    %55 = vmatpush1.msra.mxu0 0.0
    %56 = vmatprep.subr.mxu0 0.0
    %57 = vmatpush1.msra.mxu0 0.0
    %58 = vmatprep.subr.mxu0 0.0
    %59 = vmatpush1.msra.mxu0 0.0
    %60 = vmatprep.subr.mxu0 0.0
    %61 = vmatpush1.msra.mxu0 0.0
    %62 = vmatprep.subr.mxu0 0.0
    %63 = vmatpush1.msra.mxu0 0.0
    %64 = vmatprep.subr.mxu0 0.0
    %65 = vmatpush1.msra.mxu0 0.0
    %66 = vmatprep.subr.mxu0 0.0
    %67 = vmatpush1.msra.mxu0 0.0
    %68 = vmatprep.subr.mxu0 0.0
    %69 = vmatpush1.msra.mxu0 0.0
    %70 = vmatprep.subr.mxu0 0.0
    %71 = vmatpush1.msra.mxu0 0.0
    %72 = vmatprep.subr.mxu0 0.0
    %73 = vmatpush1.msra.mxu0 0.0
    %74 = vmatprep.subr.mxu0 0.0
    %75 = vmatpush1.msra.mxu0 0.0
    %76 = vmatprep.subr.mxu0 0.0
    %77 = vmatpush1.msra.mxu0 0.0
    %78 = vmatprep.subr.mxu0 0.0
    %79 = vmatpush1.msra.mxu0 0.0
    %80 = vmatprep.subr.mxu0 0.0
    %81 = vmatpush1.msra.mxu0 0.0
    %82 = vmatprep.subr.mxu0 0.0
    %83 = vmatpush1.msra.mxu0 0.0
    %84 = vmatprep.subr.mxu0 0.0
    %85 = vmatpush1.msra.mxu0 0.0
    %86 = vmatprep.subr.mxu0 0.0
    %87 = vmatpush1.msra.mxu0 0.0
    %88 = vmatprep.subr.mxu0 0.0
    %89 = vmatpush1.msra.mxu0 0.0
    %90 = vmatprep.subr.mxu0 0.0
    %91 = vmatpush1.msra.mxu0 0.0
    %92 = vmatprep.subr.mxu0 0.0
    %93 = vmatpush1.msra.mxu0 0.0
    %94 = vmatprep.subr.mxu0 0.0
    %95 = vmatpush1.msra.mxu0 0.0
    %96 = vmatprep.subr.mxu0 0.0
    %97 = vmatpush1.msra.mxu0 0.0
    %98 = vmatprep.subr.mxu0 0.0
    %99 = vmatpush1.msra.mxu0 0.0
    %100 = vmatprep.subr.mxu0 0.0
    %101 = vmatpush1.msra.mxu0 0.0
    %102 = vmatprep.subr.mxu0 0.0
    %103 = vmatpush1.msra.mxu0 0.0
    %104 = vmatprep.subr.mxu0 0.0
    %105 = vmatpush1.msra.mxu0 0.0
    %106 = vmatprep.subr.mxu0 0.0
    %107 = vmatpush1.msra.mxu0 0.0
    %108 = vmatprep.subr.mxu0 0.0
    %109 = vmatpush1.msra.mxu0 0.0
    %110 = vmatprep.mubr.f32.mxu0 0.0
    %111 = vmatmul.mubr.f32.gmra.mrb[0].mxu0 %v44
    %v112 = vpop.f32.mrb[0].mxu0
    %v113 = vadd.f32 %v40, %v112
    %v114 = vpop.f32.mrb[0].mxu0
    %115 = vdwg.mxu0
    %v116 = vmax.f32 %v113, 0.0
    %v117 = vld [vmem:[%s3] sm:$0xff]
    %v118 = vld [vmem:[%s3 + $0x8] sm:$0xff]
    %v119 = vld [vmem:[%s3 + $0x10] sm:$0xff]
    %v120 = vld [vmem:[%s3 + $0x18] sm:$0xff]
    %v121 = vld [vmem:[%s3 + $0x20] sm:$0xff]
    %v122 = vld [vmem:[%s3 + $0x28] sm:$0xff]
    %v123 = vld [vmem:[%s3 + $0x30] sm:$0xff]
    %v124 = vld [vmem:[%s3 + $0x38] sm:$0xff]
    %v125 = vld [vmem:[%s3 + $0x40] sm:$0xff]
    %v126 = vld [vmem:[%s3 + $0x48] sm:$0xff]
    %v127 = vld [vmem:[%s3 + $0x50] sm:$0xff]
    %v128 = vld [vmem:[%s3 + $0x58] sm:$0xff]
    %v129 = vld [vmem:[%s4] sm:$0x1]
    %v131 = vlaneseq
    %v132 = vshrl.u32 %v131, 7
    %v133 = vsub.s32 0, %v132
    %v134 = vrot.slane %v129, %v133
    %vm136 = vcmask 785408
    %v138 = vsel %vm136, %v116, 0
    %140 = vmatprep.subr.mxu0 0.0
    %141 = vmatpush1.msra.mxu0 %v117
    %142 = vmatprep.subr.mxu0 0.0
    %143 = vmatpush1.msra.mxu0 %v118
    %144 = vmatprep.subr.mxu0 0.0
    %145 = vmatpush1.msra.mxu0 %v119
    %146 = vmatprep.subr.mxu0 0.0
    %147 = vmatpush1.msra.mxu0 %v120
    %148 = vmatprep.subr.mxu0 0.0
    %149 = vmatpush1.msra.mxu0 %v121
    %150 = vmatprep.subr.mxu0 0.0
    %151 = vmatpush1.msra.mxu0 %v122
    %152 = vmatprep.subr.mxu0 0.0
    %153 = vmatpush1.msra.mxu0 %v123
    %154 = vmatprep.subr.mxu0 0.0
    %155 = vmatpush1.msra.mxu0 %v124
    %156 = vmatprep.subr.mxu0 0.0
    %157 = vmatpush1.msra.mxu0 %v125
    %158 = vmatprep.subr.mxu0 0.0
    %159 = vmatpush1.msra.mxu0 %v126
    %160 = vmatprep.subr.mxu0 0.0
    %161 = vmatpush1.msra.mxu0 %v127
    %162 = vmatprep.subr.mxu0 0.0
    %163 = vmatpush1.msra.mxu0 %v128
    %164 = vmatprep.subr.mxu0 0.0
    %165 = vmatpush1.msra.mxu0 0.0
    %166 = vmatprep.subr.mxu0 0.0
    %167 = vmatpush1.msra.mxu0 0.0
    %168 = vmatprep.subr.mxu0 0.0
    %169 = vmatpush1.msra.mxu0 0.0
    %170 = vmatprep.subr.mxu0 0.0
    %171 = vmatpush1.msra.mxu0 0.0
    %172 = vmatprep.subr.mxu0 0.0
    %173 = vmatpush1.msra.mxu0 0.0
    %174 = vmatprep.subr.mxu0 0.0
    %175 = vmatpush1.msra.mxu0 0.0
    %176 = vmatprep.subr.mxu0 0.0
    %177 = vmatpush1.msra.mxu0 0.0
    %178 = vmatprep.subr.mxu0 0.0
    %179 = vmatpush1.msra.mxu0 0.0
    %180 = vmatprep.subr.mxu0 0.0
    %181 = vmatpush1.msra.mxu0 0.0
    %182 = vmatprep.subr.mxu0 0.0
    %183 = vmatpush1.msra.mxu0 0.0
    %184 = vmatprep.subr.mxu0 0.0
    %185 = vmatpush1.msra.mxu0 0.0
    %186 = vmatprep.subr.mxu0 0.0
    %187 = vmatpush1.msra.mxu0 0.0
    %188 = vmatprep.subr.mxu0 0.0
    %189 = vmatpush1.msra.mxu0 0.0
    %190 = vmatprep.subr.mxu0 0.0
    %191 = vmatpush1.msra.mxu0 0.0
    %192 = vmatprep.subr.mxu0 0.0
    %193 = vmatpush1.msra.mxu0 0.0
    %194 = vmatprep.subr.mxu0 0.0
    %195 = vmatpush1.msra.mxu0 0.0
    %196 = vmatprep.subr.mxu0 0.0
    %197 = vmatpush1.msra.mxu0 0.0
    %198 = vmatprep.subr.mxu0 0.0
    %199 = vmatpush1.msra.mxu0 0.0
    %200 = vmatprep.subr.mxu0 0.0
    %201 = vmatpush1.msra.mxu0 0.0
    %202 = vmatprep.subr.mxu0 0.0
    %203 = vmatpush1.msra.mxu0 0.0
    %204 = vmatprep.mubr.f32.mxu0 0.0
    %205 = vmatmul.mubr.f32.gmra.mrb[0].mxu0 %v138
    %v206 = vpop.f32.mrb[0].mxu0
    %v207 = vadd.f32 %v134, %v206
    %v208 = vpop.f32.mrb[0].mxu0
    %209 = vdwg.mxu0
    %v210 = vmax.f32 %v207, 0.0
    %v211 = vld [vmem:[%s5] sm:$0xff]
    %v212 = vld [vmem:[%s5 + $0x8] sm:$0xff]
    %v213 = vld [vmem:[%s5 + $0x10] sm:$0xff]
    %v214 = vld [vmem:[%s5 + $0x18] sm:$0xff]
    %v215 = vld [vmem:[%s5 + $0x20] sm:$0xff]
    %v216 = vld [vmem:[%s5 + $0x28] sm:$0xff]
    %v217 = vld [vmem:[%s6] sm:$0xff]
    %v218 = vld [vmem:[%s6 + $0x8] sm:$0xff]
    %v219 = vld [vmem:[%s6 + $0x10] sm:$0xff]
    %v220 = vld [vmem:[%s6 + $0x18] sm:$0xff]
    %v221 = vld [vmem:[%s6 + $0x20] sm:$0xff]
    %v222 = vld [vmem:[%s6 + $0x28] sm:$0xff]
    %v223 = vld [vmem:[%s6 + $0x30] sm:$0xff]
    %v224 = vld [vmem:[%s6 + $0x38] sm:$0xff]
    %v225 = vld [vmem:[%s6 + $0x40] sm:$0xff]
    %v226 = vld [vmem:[%s6 + $0x48] sm:$0xff]
    %v227 = vld [vmem:[%s6 + $0x50] sm:$0xff]
    %v228 = vld [vmem:[%s6 + $0x58] sm:$0xff]
    %229 = vmatprep.subr.mxu0 0.0
    %230 = vmatpush1.msra.mxu0 %v217
    %231 = vmatprep.subr.mxu0 0.0
    %232 = vmatpush1.msra.mxu0 %v218
    %233 = vmatprep.subr.mxu0 0.0
    %234 = vmatpush1.msra.mxu0 %v219
    %235 = vmatprep.subr.mxu0 0.0
    %236 = vmatpush1.msra.mxu0 %v220
    %237 = vmatprep.subr.mxu0 0.0
    %238 = vmatpush1.msra.mxu0 %v221
    %239 = vmatprep.subr.mxu0 0.0
    %240 = vmatpush1.msra.mxu0 %v222
    %241 = vmatprep.subr.mxu0 0.0
    %242 = vmatpush1.msra.mxu0 %v223
    %243 = vmatprep.subr.mxu0 0.0
    %244 = vmatpush1.msra.mxu0 %v224
    %245 = vmatprep.subr.mxu0 0.0
    %246 = vmatpush1.msra.mxu0 %v225
    %247 = vmatprep.subr.mxu0 0.0
    %248 = vmatpush1.msra.mxu0 %v226
    %249 = vmatprep.subr.mxu0 0.0
    %250 = vmatpush1.msra.mxu0 %v227
    %251 = vmatprep.subr.mxu0 0.0
    %252 = vmatpush1.msra.mxu0 %v228
    %253 = vmatprep.subr.mxu0 0.0
    %254 = vmatpush1.msra.mxu0 0.0
    %255 = vmatprep.subr.mxu0 0.0
    %256 = vmatpush1.msra.mxu0 0.0
    %257 = vmatprep.subr.mxu0 0.0
    %258 = vmatpush1.msra.mxu0 0.0
    %259 = vmatprep.subr.mxu0 0.0
    %260 = vmatpush1.msra.mxu0 0.0
    %261 = vmatprep.subr.mxu0 0.0
    %262 = vmatpush1.msra.mxu0 0.0
    %263 = vmatprep.subr.mxu0 0.0
    %264 = vmatpush1.msra.mxu0 0.0
    %265 = vmatprep.subr.mxu0 0.0
    %266 = vmatpush1.msra.mxu0 0.0
    %267 = vmatprep.subr.mxu0 0.0
    %268 = vmatpush1.msra.mxu0 0.0
    %269 = vmatprep.subr.mxu0 0.0
    %270 = vmatpush1.msra.mxu0 0.0
    %271 = vmatprep.subr.mxu0 0.0
    %272 = vmatpush1.msra.mxu0 0.0
    %273 = vmatprep.subr.mxu0 0.0
    %274 = vmatpush1.msra.mxu0 0.0
    %275 = vmatprep.subr.mxu0 0.0
    %276 = vmatpush1.msra.mxu0 0.0
    %277 = vmatprep.subr.mxu0 0.0
    %278 = vmatpush1.msra.mxu0 0.0
    %279 = vmatprep.subr.mxu0 0.0
    %280 = vmatpush1.msra.mxu0 0.0
    %281 = vmatprep.subr.mxu0 0.0
    %282 = vmatpush1.msra.mxu0 0.0
    %283 = vmatprep.subr.mxu0 0.0
    %284 = vmatpush1.msra.mxu0 0.0
    %285 = vmatprep.subr.mxu0 0.0
    %286 = vmatpush1.msra.mxu0 0.0
    %287 = vmatprep.subr.mxu0 0.0
    %288 = vmatpush1.msra.mxu0 0.0
    %289 = vmatprep.subr.mxu0 0.0
    %290 = vmatpush1.msra.mxu0 0.0
    %291 = vmatprep.subr.mxu0 0.0
    %292 = vmatpush1.msra.mxu0 0.0
    %293 = vmatprep.mubr.f32.mxu0 0.0
    %294 = vmatmul.mubr.f32.gmra.mrb[0].mxu0 %v138
    %v295 = vpop.f32.mrb[0].mxu0
    %v296 = vadd.f32 0.0, %v295
    %v297 = vpop.f32.mrb[0].mxu0
    %298 = vdwg.mxu0
    %vm299 = vcmask 392192
    %v301 = vsel %vm299, %v210, 0
    %303 = vmatprep.subr.mxu0 0.0
    %304 = vmatpush1.msra.mxu0 %v211
    %305 = vmatprep.subr.mxu0 0.0
    %306 = vmatpush1.msra.mxu0 %v212
    %307 = vmatprep.subr.mxu0 0.0
    %308 = vmatpush1.msra.mxu0 %v213
    %309 = vmatprep.subr.mxu0 0.0
    %310 = vmatpush1.msra.mxu0 %v214
    %311 = vmatprep.subr.mxu0 0.0
    %312 = vmatpush1.msra.mxu0 %v215
    %313 = vmatprep.subr.mxu0 0.0
    %314 = vmatpush1.msra.mxu0 %v216
    %315 = vmatprep.subr.mxu0 0.0
    %316 = vmatpush1.msra.mxu0 0.0
    %317 = vmatprep.subr.mxu0 0.0
    %318 = vmatpush1.msra.mxu0 0.0
    %319 = vmatprep.subr.mxu0 0.0
    %320 = vmatpush1.msra.mxu0 0.0
    %321 = vmatprep.subr.mxu0 0.0
    %322 = vmatpush1.msra.mxu0 0.0
    %323 = vmatprep.subr.mxu0 0.0
    %324 = vmatpush1.msra.mxu0 0.0
    %325 = vmatprep.subr.mxu0 0.0
    %326 = vmatpush1.msra.mxu0 0.0
    %327 = vmatprep.subr.mxu0 0.0
    %328 = vmatpush1.msra.mxu0 0.0
    %329 = vmatprep.subr.mxu0 0.0
    %330 = vmatpush1.msra.mxu0 0.0
    %331 = vmatprep.subr.mxu0 0.0
    %332 = vmatpush1.msra.mxu0 0.0
    %333 = vmatprep.subr.mxu0 0.0
    %334 = vmatpush1.msra.mxu0 0.0
    %335 = vmatprep.subr.mxu0 0.0
    %336 = vmatpush1.msra.mxu0 0.0
    %337 = vmatprep.subr.mxu0 0.0
    %338 = vmatpush1.msra.mxu0 0.0
    %339 = vmatprep.subr.mxu0 0.0
    %340 = vmatpush1.msra.mxu0 0.0
    %341 = vmatprep.subr.mxu0 0.0
    %342 = vmatpush1.msra.mxu0 0.0
    %343 = vmatprep.subr.mxu0 0.0
    %344 = vmatpush1.msra.mxu0 0.0
    %345 = vmatprep.subr.mxu0 0.0
    %346 = vmatpush1.msra.mxu0 0.0
    %347 = vmatprep.subr.mxu0 0.0
    %348 = vmatpush1.msra.mxu0 0.0
    %349 = vmatprep.subr.mxu0 0.0
    %350 = vmatpush1.msra.mxu0 0.0
    %351 = vmatprep.subr.mxu0 0.0
    %352 = vmatpush1.msra.mxu0 0.0
    %353 = vmatprep.subr.mxu0 0.0
    %354 = vmatpush1.msra.mxu0 0.0
    %355 = vmatprep.subr.mxu0 0.0
    %356 = vmatpush1.msra.mxu0 0.0
    %357 = vmatprep.subr.mxu0 0.0
    %358 = vmatpush1.msra.mxu0 0.0
    %359 = vmatprep.subr.mxu0 0.0
    %360 = vmatpush1.msra.mxu0 0.0
    %361 = vmatprep.subr.mxu0 0.0
    %362 = vmatpush1.msra.mxu0 0.0
    %363 = vmatprep.subr.mxu0 0.0
    %364 = vmatpush1.msra.mxu0 0.0
    %365 = vmatprep.subr.mxu0 0.0
    %366 = vmatpush1.msra.mxu0 0.0
    %367 = vmatprep.mubr.f32.mxu0 0.0
    %368 = vmatmul.mubr.f32.gmra.mrb[0].mxu0 %v301
    %v369 = vpop.f32.mrb[0].mxu0
    %v370 = vadd.f32 %v296, %v369
    %v371 = vpop.f32.mrb[0].mxu0
    %372 = vdwg.mxu0
    %v373 = vld [vmem:[%s7] sm:$0x1]
    %v375 = vlaneseq
    %v376 = vshrl.u32 %v375, 7
    %v377 = vsub.s32 0, %v376
    %v378 = vrot.slane %v373, %v377
    %v380 = vadd.f32 %v370, %v378
    %381 = vst.msk [vmem:[#allocation2] sm:$0xff] %vm299, %v380
    // Predicated region
    $region34: #{tpu_custom_call.1} parent=1 // pred_check
      _
    $region35: #{tpu_custom_call.1} parent=1 // pred_check_branch
      %383 = sbr.rel (0) target = $region37
    $region36: #{tpu_custom_call.1} parent=1 // pred_region
      %s385 = ssub.s32 128, 128
      %386 = vsyncadd [#allocation3], %s385
      %s388 = sshll.u32 [#allocation2], 4
      %s389 = int_to_ptr.vmem [resolvable:$true] %s388
      %391 = dma.vmem_to_hbm [thread:$0]  %s389, 128, %s8, [#allocation3]
    $region37: #{tpu_custom_call.1} parent=1 // pred_fallthru
      _
    // Predicated region
    $region38: #{tpu_custom_call.1} parent=1 // pred_check
      _
    $region39: #{tpu_custom_call.1} parent=1 // pred_check_branch
      %393 = sbr.rel (0) target = $region41
    $region40: #{tpu_custom_call.1} parent=1 // pred_region
      %394 = dma.done [#allocation3], 128
    $region41: #{tpu_custom_call.1} parent=1 // pred_fallthru
      _
    %395 = vsyncpa [#allocation3], 1

</llo_original>
